<compile_context>
chip_gen: v6e
topology: v6e:2x2x1
jax: 0.10.0
libtpu: 0.0.40
codegen_flags: <defaults>
</compile_context>

<pallas_src>
import functools

import jax
import jax.numpy as jnp
from jax.experimental import pallas as pl
from jax.experimental.pallas import tpu as pltpu


# -----------------------------------------------------------------------------
# Kernel: fused LayerNorm + spatial (token) mixing for one batch tile.
#
# In-kernel layout: patches on sublanes, channels on lanes (module's own layout).
#   x_ref, o_ref : (bt, N, C)
#   nw_ref, nb_ref : (1, C)    LayerNorm affine params (lane-major)
#   w_ref  : (N, N)            token-mix weight, torch layout (out, in)
#   b_ref  : (N, 1)            token-mix bias (per output patch)
# -----------------------------------------------------------------------------
def spatial_mix_kernel(x_ref, nw_ref, nb_ref, w_ref, b_ref, o_ref, *, mxu_dtype):
    bt, n, c = x_ref.shape

    # Hoisted, loop-invariant values (JAX does not CSE broadcasts inside loops).
    nw = nw_ref[...].astype(jnp.float32)                     # (1, C)
    nb = nb_ref[...].astype(jnp.float32)                     # (1, C)
    w = w_ref[...].astype(mxu_dtype)                         # (N, N) resident
    bias = jnp.broadcast_to(b_ref[...].astype(jnp.float32), (n, c))   # (N, C)

    @pl.loop(0, bt)
    def _(i):
        xi = x_ref[i].astype(jnp.float32)                    # (N, C)

        # ---- LayerNorm over channels (lane axis), two-pass variance ----
        mu = jnp.mean(xi, axis=-1, keepdims=True)            # (N, 1)
        d = xi - mu
        var = jnp.mean(d * d, axis=-1, keepdims=True)        # (N, 1)
        hi = d * jax.lax.rsqrt(var + 1e-5) * nw + nb         # (N, C)

        # ---- Token mixing: (N_out, N_in) @ (N_in, C) -> (N_out, C) on the MXU.
        # C is the output / lane dim -> lane-dense store.
        yi = jnp.dot(w, hi.astype(mxu_dtype),
                     preferred_element_type=jnp.float32)     # (N, C) f32
        o_ref[i] = (yi + bias).astype(o_ref.dtype)


# -----------------------------------------------------------------------------
# Tiling plan: batch-tile size + scoped-VMEM request, per chip generation.
# -----------------------------------------------------------------------------
def _plan_tiling(B, N, C, itemsize=4):
    try:
        vmem_phys = int(pltpu.get_tpu_info().vmem_capacity_bytes)
    except Exception:
        vmem_phys = 64 * 1024 * 1024          # conservative fallback (v7x per-TC)

    # Scoped VMEM request: ~48 MiB on v7x (64 MiB physical), capped at 96 MiB
    # on v5e/v6e (128 MiB physical).
    vmem_limit = min((vmem_phys * 3) // 4, 96 * 1024 * 1024)
    budget = (vmem_limit * 9) // 10           # leave headroom for compiler scratch

    # Resident (single-buffered, constant index_map) operands.
    resident = (N * N + 2 * C + N) * itemsize          # W + LN affine + bias
    # Per batch element: double-buffered in block + double-buffered out block
    # + ~3 live f32 temps (x, normalized h, matmul result).
    per_b = N * C * itemsize
    live_per_b = (2 + 2 + 3) * per_b

    if resident + live_per_b > budget:
        # TODO(synk): tile the N (token) axis when the resident (N, N) weight
        # alone blows the per-generation VMEM budget (e.g. N >= ~3000 on v7x).
        raise ValueError(
            f"SpatialMix kernel needs N-axis tiling for n_patches={N} "
            f"(resident weight {N*N*itemsize} B exceeds VMEM budget {budget} B)")

    bt = max(1, (budget - resident) // live_per_b)
    if B > 1:
        bt = min(bt, max(1, B // 2))   # >= 2 grid steps -> both v7x TensorCores busy
    bt = min(bt, B)
    return int(bt), int(vmem_limit)


# -----------------------------------------------------------------------------
# Wrapper
# -----------------------------------------------------------------------------
def spatial_mix(x, norm_w, norm_b, lin_w, lin_b, *, mxu_dtype=jnp.float32):
    """SpatialMix forward.

    x:      (B, N, C)      norm_w/norm_b: (C,) LayerNorm affine
    lin_w:  (N, N) torch Linear weight (out, in)    lin_b: (N,)
    returns (B, N, C)
    """
    B, N, C = x.shape
    bt, vmem_limit = _plan_tiling(B, N, C)

    kernel = functools.partial(spatial_mix_kernel, mxu_dtype=mxu_dtype)

    return pl.pallas_call(
        kernel,
        out_shape=jax.ShapeDtypeStruct((B, N, C), x.dtype),
        grid_spec=pltpu.PrefetchScalarGridSpec(
            num_scalar_prefetch=0,
            grid=(pl.cdiv(B, bt),),
            in_specs=[
                pl.BlockSpec((bt, N, C), lambda i: (i, 0, 0)),   # x (native layout)
                pl.BlockSpec((1, C), lambda i: (0, 0)),          # LN weight (lane-major)
                pl.BlockSpec((1, C), lambda i: (0, 0)),          # LN bias
                pl.BlockSpec((N, N), lambda i: (0, 0)),          # token-mix W (resident)
                pl.BlockSpec((N, 1), lambda i: (0, 0)),          # token-mix bias
            ],
            out_specs=pl.BlockSpec((bt, N, C), lambda i: (i, 0, 0)),
        ),
        compiler_params=pltpu.CompilerParams(
            dimension_semantics=("parallel",),   # batch tiles -> both TCs on v7x
            vmem_limit_bytes=vmem_limit,
        ),
    )(x, norm_w.reshape(1, C), norm_b.reshape(1, C), lin_w, lin_b.reshape(N, 1))


spatial_mix_jit = jax.jit(spatial_mix, static_argnames=("mxu_dtype",))


# -----------------------------------------------------------------------------
# Deterministic parameter construction (matches torch defaults)
# -----------------------------------------------------------------------------
def init_spatial_mix(key, n_patches, dim):
    kw, kb = jax.random.split(key)
    bound = 1.0 / jnp.sqrt(float(n_patches))
    lin_w = jax.random.uniform(kw, (n_patches, n_patches), jnp.float32, -bound, bound)
    lin_b = jax.random.uniform(kb, (n_patches,), jnp.float32, -bound, bound)
    norm_w = jnp.ones((dim,), jnp.float32)    # nn.LayerNorm default affine
    norm_b = jnp.zeros((dim,), jnp.float32)
    return norm_w, norm_b, lin_w, lin_b


def spatial_mix_reference(x, norm_w, norm_b, lin_w, lin_b):
    """Pure-JAX reference of the PyTorch module (for the in-script sanity check)."""
    mu = jnp.mean(x, axis=-1, keepdims=True)
    var = jnp.mean((x - mu) ** 2, axis=-1, keepdims=True)
    h = (x - mu) * jax.lax.rsqrt(var + 1e-5) * norm_w + norm_b       # (B, N, C)
    ht = jnp.transpose(h, (0, 2, 1))                                  # (B, C, N)
    y = jnp.einsum("bcn,on->bco", ht, lin_w,
                   precision=jax.lax.Precision.HIGHEST) + lin_b
    return jnp.transpose(y, (0, 2, 1))                                # (B, N, C)


# -----------------------------------------------------------------------------
if __name__ == "__main__":
    # x is [Batch, N (patches), Channels] per the module's convention.
    batch, n_patches, channels = 2, 8, 32

    key = jax.random.PRNGKey(0)
    k_params, k_x = jax.random.split(key)
    norm_w, norm_b, lin_w, lin_b = init_spatial_mix(k_params, n_patches, channels)
    x = jax.random.normal(k_x, (batch, n_patches, channels), jnp.float32)

    out = spatial_mix_jit(x, norm_w, norm_b, lin_w, lin_b)
    jax.block_until_ready(out)
    assert out.shape == (batch, n_patches, channels)

    ref = spatial_mix_reference(x, norm_w, norm_b, lin_w, lin_b)
    assert bool(jnp.allclose(out, ref, rtol=1e-3, atol=1e-3)), "mismatch vs reference"

    print("KERNEL_OK")
</pallas_src>

<mosaic_0001>
module attributes {stable_mosaic.version = 11 : i64} {
  func.func @spatial_mix_kernel(%arg0: i32, %arg1: memref<1x8x32xf32, #tpu.memory_space<vmem>>, %arg2: memref<1x32xf32, #tpu.memory_space<vmem>>, %arg3: memref<1x32xf32, #tpu.memory_space<vmem>>, %arg4: memref<8x8xf32, #tpu.memory_space<vmem>>, %arg5: memref<8x1xf32, #tpu.memory_space<vmem>>, %arg6: memref<1x8x32xf32, #tpu.memory_space<vmem>>) attributes {dimension_semantics = [#tpu.dimension_semantics<parallel>], iteration_bounds = array<i64: 2>, scalar_prefetch = 0 : i64, scratch_operands = 0 : i64, tpu.core_type = #tpu.core_type<tc>, window_params = [{transform_indices = @transform_0, window_bounds = array<i64: 1, 8, 32>}, {pipeline_mode = #tpu.pipeline_mode<synchronous>, transform_indices = @transform_1, window_bounds = array<i64: 1, 32>}, {pipeline_mode = #tpu.pipeline_mode<synchronous>, transform_indices = @transform_2, window_bounds = array<i64: 1, 32>}, {pipeline_mode = #tpu.pipeline_mode<synchronous>, transform_indices = @transform_3, window_bounds = array<i64: 8, 8>}, {pipeline_mode = #tpu.pipeline_mode<synchronous>, transform_indices = @transform_4, window_bounds = array<i64: 8, 1>}, {transform_indices = @transform_5, window_bounds = array<i64: 1, 8, 32>}]} {
    %c0 = arith.constant 0 : index
    %c0_0 = arith.constant 0 : index
    %0 = vector.load %arg2[%c0, %c0_0] : memref<1x32xf32, #tpu.memory_space<vmem>>, vector<1x32xf32>
    %c0_1 = arith.constant 0 : index
    %c0_2 = arith.constant 0 : index
    %1 = vector.load %arg3[%c0_1, %c0_2] : memref<1x32xf32, #tpu.memory_space<vmem>>, vector<1x32xf32>
    %c0_3 = arith.constant 0 : index
    %c0_4 = arith.constant 0 : index
    %2 = vector.load %arg4[%c0_3, %c0_4] : memref<8x8xf32, #tpu.memory_space<vmem>>, vector<8x8xf32>
    %c0_5 = arith.constant 0 : index
    %c0_6 = arith.constant 0 : index
    %3 = vector.load %arg5[%c0_5, %c0_6] : memref<8x1xf32, #tpu.memory_space<vmem>>, vector<8x1xf32>
    %4 = vector.shape_cast %3 : vector<8x1xf32> to vector<8x1xf32>
    %5 = vector.broadcast %4 : vector<8x1xf32> to vector<8x32xf32>
    %c0_i32 = arith.constant 0 : i32
    %c1_i32 = arith.constant 1 : i32
    %6 = arith.muli %c0_i32, %c1_i32 : i32
    %c0_i32_7 = arith.constant 0 : i32
    %7 = arith.addi %c0_i32_7, %6 : i32
    %8 = arith.index_cast %7 : i32 to index
    %c0_8 = arith.constant 0 : index
    %c0_9 = arith.constant 0 : index
    %9 = vector.load %arg1[%8, %c0_8, %c0_9] : memref<1x8x32xf32, #tpu.memory_space<vmem>>, vector<1x8x32xf32>
    %10 = vector.shape_cast %9 : vector<1x8x32xf32> to vector<8x32xf32>
    %cst = arith.constant dense<0.000000e+00> : vector<8xf32>
    %11 = vector.multi_reduction <add>, %10, %cst [1] : vector<8x32xf32> to vector<8xf32>
    %12 = vector.shape_cast %11 : vector<8xf32> to vector<8x1xf32>
    %cst_10 = arith.constant 3.200000e+01 : f32
    %13 = vector.broadcast %cst_10 : f32 to vector<8x1xf32>
    %14 = arith.divf %12, %13 : vector<8x1xf32>
    %15 = vector.broadcast %14 : vector<8x1xf32> to vector<8x32xf32>
    %16 = arith.subf %10, %15 : vector<8x32xf32>
    %17 = arith.mulf %16, %16 : vector<8x32xf32>
    %cst_11 = arith.constant dense<0.000000e+00> : vector<8xf32>
    %18 = vector.multi_reduction <add>, %17, %cst_11 [1] : vector<8x32xf32> to vector<8xf32>
    %19 = vector.shape_cast %18 : vector<8xf32> to vector<8x1xf32>
    %cst_12 = arith.constant 3.200000e+01 : f32
    %20 = vector.broadcast %cst_12 : f32 to vector<8x1xf32>
    %21 = arith.divf %19, %20 : vector<8x1xf32>
    %cst_13 = arith.constant 9.99999974E-6 : f32
    %22 = vector.broadcast %cst_13 : f32 to vector<8x1xf32>
    %23 = arith.addf %21, %22 : vector<8x1xf32>
    %24 = math.rsqrt %23 : vector<8x1xf32>
    %25 = vector.broadcast %24 : vector<8x1xf32> to vector<8x32xf32>
    %26 = arith.mulf %16, %25 : vector<8x32xf32>
    %27 = vector.broadcast %0 : vector<1x32xf32> to vector<8x32xf32>
    %28 = arith.mulf %26, %27 : vector<8x32xf32>
    %29 = vector.broadcast %1 : vector<1x32xf32> to vector<8x32xf32>
    %30 = arith.addf %28, %29 : vector<8x32xf32>
    %cst_14 = arith.constant dense<0.000000e+00> : vector<8x32xf32>
    %31 = tpu.matmul %2, %30, %cst_14 {dimension_numbers = #tpu.dot_dimension_numbers<[1], [0], [0], [1], [0, 0, 1, 1], [], []>} : vector<8x8xf32>, vector<8x32xf32>, vector<8x32xf32> -> vector<8x32xf32>
    %32 = arith.addf %31, %5 : vector<8x32xf32>
    %33 = arith.index_cast %7 : i32 to index
    %c0_15 = arith.constant 0 : index
    %c0_16 = arith.constant 0 : index
    %34 = vector.load %arg6[%33, %c0_15, %c0_16] : memref<1x8x32xf32, #tpu.memory_space<vmem>>, vector<1x8x32xf32>
    %35 = vector.shape_cast %34 : vector<1x8x32xf32> to vector<8x32xf32>
    %36 = vector.shape_cast %32 : vector<8x32xf32> to vector<1x8x32xf32>
    tpu.vector_store %arg6[%33, %c0_15, %c0_16], %36 {strides = array<i32>} : memref<1x8x32xf32, #tpu.memory_space<vmem>>, vector<1x8x32xf32>,
    %c1_i32_17 = arith.constant 1 : i32
    return
  }
  func.func @transform_0(%arg0: i32) -> (i32, i32, i32) {
    %c0_i32 = arith.constant 0 : i32
    %c0_i32_0 = arith.constant 0 : i32
    %c0_i32_1 = arith.constant 0 : i32
    return %arg0, %c0_i32, %c0_i32_0 : i32, i32, i32
  }
  func.func @transform_1(%arg0: i32) -> (i32, i32) {
    %c0_i32 = arith.constant 0 : i32
    %c0_i32_0 = arith.constant 0 : i32
    %c0_i32_1 = arith.constant 0 : i32
    return %c0_i32, %c0_i32_0 : i32, i32
  }
  func.func @transform_2(%arg0: i32) -> (i32, i32) {
    %c0_i32 = arith.constant 0 : i32
    %c0_i32_0 = arith.constant 0 : i32
    %c0_i32_1 = arith.constant 0 : i32
    return %c0_i32, %c0_i32_0 : i32, i32
  }
  func.func @transform_3(%arg0: i32) -> (i32, i32) {
    %c0_i32 = arith.constant 0 : i32
    %c0_i32_0 = arith.constant 0 : i32
    %c0_i32_1 = arith.constant 0 : i32
    return %c0_i32, %c0_i32_0 : i32, i32
  }
  func.func @transform_4(%arg0: i32) -> (i32, i32) {
    %c0_i32 = arith.constant 0 : i32
    %c0_i32_0 = arith.constant 0 : i32
    %c0_i32_1 = arith.constant 0 : i32
    return %c0_i32, %c0_i32_0 : i32, i32
  }
  func.func @transform_5(%arg0: i32) -> (i32, i32, i32) {
    %c0_i32 = arith.constant 0 : i32
    %c0_i32_0 = arith.constant 0 : i32
    %c0_i32_1 = arith.constant 0 : i32
    return %arg0, %c0_i32, %c0_i32_0 : i32, i32, i32
  }
}

</mosaic_0001>

<llo_original>
// kernel: spatial_mix.1
$region0: #{spatial_mix.1}
  #allocation0 [shape = 'u32[]', space=smem, size = 0x4, offset = 0x4, fixed_abs, tag = 'smem constant byte address 0x4 - core index']
  #allocation1 [shape = 'u32[144,128]{1,0:T(1,128)}', space=vmem, size = 0x12000, scoped, tag = 'internal scratch']
  %s0 = inlined_call_operand.hbm [shape: f32[2,8,32], index: 0, kind: input, shape index: {}]
  %s1 = inlined_call_operand.vmem [shape: f32[1,32], index: 1, kind: input, shape index: {}]
  %s2 = inlined_call_operand.vmem [shape: f32[1,32], index: 2, kind: input, shape index: {}]
  %s3 = inlined_call_operand.vmem [shape: f32[8,8], index: 3, kind: input, shape index: {}]
  %s4 = inlined_call_operand.vmem [shape: f32[8,1], index: 4, kind: input, shape index: {}]
  %s5 = inlined_call_operand.hbm [shape: f32[2,8,32], index: 5, kind: output, shape index: {}]
  %s6 = sld [smem:[#allocation0]]
  $region57: #{spatial_mix.1} parent=0
    _
  %s8 = ssub.s32 1, %s6
  %s9 = scalar_select 0, %s8, %s6
  $region1: #{spatial_mix.1} parent=0
    #allocation2 [shape = 'u8[8192]{0}', space=vmem, size = 0x2000, scoped, tag = 'input window, operand 0']
    #allocation3 [shape = 's32[2]{0}', space=sflag, size = 0x8, scoped, tag = 'scoped memory for spatial_mix.1']
    #allocation4 [shape = 's32[2]{0}', space=sflag, size = 0x8, scoped, tag = 'scoped memory for spatial_mix.1']
    #allocation5 [shape = 'u8[8192]{0}', space=vmem, size = 0x2000, scoped, tag = 'output window, operand 0']
    %10 = vsyncpa [#allocation3], 0
    %s11 = scalar_lea.sflag [#allocation3], 1
    %12 = vsyncpa %s11, 0
    %13 = vsyncpa [#allocation4], 0
    %s14 = scalar_lea.sflag [#allocation4], 1
    %15 = vsyncpa %s14, 0
    loop: start=0, step=1, limit=4
    $region2: #{spatial_mix.1} parent=1 // loop_pre_header
      _
    $region3: #{spatial_mix.1} parent=1 // loop_header
      %s17 = sphi 0, %s21
      %p18 = scmp.ge.s32.totalorder %s17, 4
      %s27 = sphi 0, %s29
      %s30 = sphi 0, %s27
      %s31 = sphi 0, %s30
      %s47 = sphi 0, %s31
      %s51 = sphi 0, %s51
      %s53 = sphi 0, %s51
      %s54 = sphi 0, %s53
      %s68 = sphi 0, %s54
      %s72 = sphi 0, %s72
      %s74 = sphi 0, %s72
      %s75 = sphi 0, %s74
      %s89 = sphi 0, %s75
      %s93 = sphi 0, %s93
      %s95 = sphi 0, %s93
      %s96 = sphi 0, %s95
      %s110 = sphi 0, %s96
      %s114 = sphi 0, %s114
      %s116 = sphi 0, %s114
      %s117 = sphi 0, %s116
      %s131 = sphi 0, %s117
      %s137 = sphi 0, %s139
      %s140 = sphi 0, %s137
      %s141 = sphi 0, %s140
      %s157 = sphi 0, %s141
    $region4: #{spatial_mix.1} parent=1 // loop_header_branch
      %20 = sbr.rel (%p18) target = $region8
    $region5: #{spatial_mix.1} parent=1 // loop_body
      %s22 = ssub.s32 %s17, 1
      %s23 = ssub.s32 %s17, 2
      %s24 = sadd.s32 %s17, 1
      %s25 = ssub.s32 %s17, %s24
      %p26 = scmp.eq.s32.totalorder %s25, 0
      %s28 = sadd.s32 %s27, 1
      %s29 = scalar_select %p26, %s27, %s28
      %p32 = pneg %p26
      %p33 = scmp.eq.s32.totalorder %s17, 1
      %p34 = por %p32, %p33
      %p35 = scmp.ne.s32.totalorder %s27, %s30
      %p36 = scmp.eq.s32.totalorder %s17, 0
      %p37 = por %p35, %p36
      %p38 = scmp.ne.s32.totalorder %s27, %s30
      %p39 = scmp.eq.s32.totalorder %s22, 1
      %p40 = por %p38, %p39
      %p41 = scmp.ne.s32.totalorder %s30, %s31
      %p42 = scmp.eq.s32.totalorder %s22, 0
      %p43 = por %p41, %p42
      %p44 = scmp.ne.s32.totalorder %s30, %s31
      %p45 = scmp.eq.s32.totalorder %s23, 1
      %p46 = por %p44, %p45
      %p48 = scmp.ne.s32.totalorder %s31, %s47
      %p49 = scmp.eq.s32.totalorder %s23, 0
      %p50 = por %p48, %p49
      %s52 = sadd.s32 %s51, 1
      %p55 = scmp.eq.s32.totalorder %s17, 1
      %p56 = scmp.ne.s32.totalorder %s51, %s53
      %p57 = scmp.eq.s32.totalorder %s17, 0
      %p58 = por %p56, %p57
      %p59 = scmp.ne.s32.totalorder %s51, %s53
      %p60 = scmp.eq.s32.totalorder %s22, 1
      %p61 = por %p59, %p60
      %p62 = scmp.ne.s32.totalorder %s53, %s54
      %p63 = scmp.eq.s32.totalorder %s22, 0
      %p64 = por %p62, %p63
      %p65 = scmp.ne.s32.totalorder %s53, %s54
      %p66 = scmp.eq.s32.totalorder %s23, 1
      %p67 = por %p65, %p66
      %p69 = scmp.ne.s32.totalorder %s54, %s68
      %p70 = scmp.eq.s32.totalorder %s23, 0
      %p71 = por %p69, %p70
      %s73 = sadd.s32 %s72, 1
      %p76 = scmp.eq.s32.totalorder %s17, 1
      %p77 = scmp.ne.s32.totalorder %s72, %s74
      %p78 = scmp.eq.s32.totalorder %s17, 0
      %p79 = por %p77, %p78
      %p80 = scmp.ne.s32.totalorder %s72, %s74
      %p81 = scmp.eq.s32.totalorder %s22, 1
      %p82 = por %p80, %p81
      %p83 = scmp.ne.s32.totalorder %s74, %s75
      %p84 = scmp.eq.s32.totalorder %s22, 0
      %p85 = por %p83, %p84
      %p86 = scmp.ne.s32.totalorder %s74, %s75
      %p87 = scmp.eq.s32.totalorder %s23, 1
      %p88 = por %p86, %p87
      %p90 = scmp.ne.s32.totalorder %s75, %s89
      %p91 = scmp.eq.s32.totalorder %s23, 0
      %p92 = por %p90, %p91
      %s94 = sadd.s32 %s93, 1
      %p97 = scmp.eq.s32.totalorder %s17, 1
      %p98 = scmp.ne.s32.totalorder %s93, %s95
      %p99 = scmp.eq.s32.totalorder %s17, 0
      %p100 = por %p98, %p99
      %p101 = scmp.ne.s32.totalorder %s93, %s95
      %p102 = scmp.eq.s32.totalorder %s22, 1
      %p103 = por %p101, %p102
      %p104 = scmp.ne.s32.totalorder %s95, %s96
      %p105 = scmp.eq.s32.totalorder %s22, 0
      %p106 = por %p104, %p105
      %p107 = scmp.ne.s32.totalorder %s95, %s96
      %p108 = scmp.eq.s32.totalorder %s23, 1
      %p109 = por %p107, %p108
      %p111 = scmp.ne.s32.totalorder %s96, %s110
      %p112 = scmp.eq.s32.totalorder %s23, 0
      %p113 = por %p111, %p112
      %s115 = sadd.s32 %s114, 1
      %p118 = scmp.eq.s32.totalorder %s17, 1
      %p119 = scmp.ne.s32.totalorder %s114, %s116
      %p120 = scmp.eq.s32.totalorder %s17, 0
      %p121 = por %p119, %p120
      %p122 = scmp.ne.s32.totalorder %s114, %s116
      %p123 = scmp.eq.s32.totalorder %s22, 1
      %p124 = por %p122, %p123
      %p125 = scmp.ne.s32.totalorder %s116, %s117
      %p126 = scmp.eq.s32.totalorder %s22, 0
      %p127 = por %p125, %p126
      %p128 = scmp.ne.s32.totalorder %s116, %s117
      %p129 = scmp.eq.s32.totalorder %s23, 1
      %p130 = por %p128, %p129
      %p132 = scmp.ne.s32.totalorder %s117, %s131
      %p133 = scmp.eq.s32.totalorder %s23, 0
      %p134 = por %p132, %p133
      %s135 = ssub.s32 %s17, %s24
      %p136 = scmp.eq.s32.totalorder %s135, 0
      %s138 = sadd.s32 %s137, 1
      %s139 = scalar_select %p136, %s137, %s138
      %p142 = pneg %p136
      %p143 = scmp.eq.s32.totalorder %s17, 1
      %p144 = por %p142, %p143
      %p145 = scmp.ne.s32.totalorder %s137, %s140
      %p146 = scmp.eq.s32.totalorder %s17, 0
      %p147 = por %p145, %p146
      %p148 = scmp.ne.s32.totalorder %s137, %s140
      %p149 = scmp.eq.s32.totalorder %s22, 1
      %p150 = por %p148, %p149
      %p151 = scmp.ne.s32.totalorder %s140, %s141
      %p152 = scmp.eq.s32.totalorder %s22, 0
      %p153 = por %p151, %p152
      %p154 = scmp.ne.s32.totalorder %s140, %s141
      %p155 = scmp.eq.s32.totalorder %s23, 1
      %p156 = por %p154, %p155
      %p158 = scmp.ne.s32.totalorder %s141, %s157
      %p159 = scmp.eq.s32.totalorder %s23, 0
      %p160 = por %p158, %p159
      %p161 = scmp.le.s32.totalorder 1, %s17
      %p162 = scmp.lt.s32.totalorder %s17, 3
      %p163 = pnand %p161, %p162
      %p164 = pneg %p163
      // Predicated region
      $region9: #{spatial_mix.1} parent=5 // pred_check
        _
      $region10: #{spatial_mix.1} parent=5 // pred_check_branch
        %166 = sbr.rel (%p163) target = $region12
      $region11: #{spatial_mix.1} parent=5 // pred_region
        %s167 = ssub.s32 %s17, 1
        // Predicated region
        $region13: #{spatial_mix.1} parent=11 // pred_check
          %p168 = pneg %p64
        $region14: #{spatial_mix.1} parent=11 // pred_check_branch
          %170 = sbr.rel (%p168) target = $region16
        $region15: #{spatial_mix.1} parent=11 // pred_region
          _
        $region16: #{spatial_mix.1} parent=11 // pred_fallthru
          _
        // Predicated region
        $region17: #{spatial_mix.1} parent=11 // pred_check
          %p171 = pneg %p85
        $region18: #{spatial_mix.1} parent=11 // pred_check_branch
          %173 = sbr.rel (%p171) target = $region20
        $region19: #{spatial_mix.1} parent=11 // pred_region
          _
        $region20: #{spatial_mix.1} parent=11 // pred_fallthru
          _
        // Predicated region
        $region21: #{spatial_mix.1} parent=11 // pred_check
          %p174 = pneg %p106
        $region22: #{spatial_mix.1} parent=11 // pred_check_branch
          %176 = sbr.rel (%p174) target = $region24
        $region23: #{spatial_mix.1} parent=11 // pred_region
          _
        $region24: #{spatial_mix.1} parent=11 // pred_fallthru
          _
        // Predicated region
        $region25: #{spatial_mix.1} parent=11 // pred_check
          %p177 = pneg %p127
        $region26: #{spatial_mix.1} parent=11 // pred_check_branch
          %179 = sbr.rel (%p177) target = $region28
        $region27: #{spatial_mix.1} parent=11 // pred_region
          _
        $region28: #{spatial_mix.1} parent=11 // pred_fallthru
          _
      $region12: #{spatial_mix.1} parent=5 // pred_fallthru
        _
      %p180 = scmp.lt.s32.totalorder %s17, 2
      // Predicated region
      $region29: #{spatial_mix.1} parent=5 // pred_check
        %p181 = pneg %p180
      $region30: #{spatial_mix.1} parent=5 // pred_check_branch
        %183 = sbr.rel (%p181) target = $region32
      $region31: #{spatial_mix.1} parent=5 // pred_region
        // Predicated region
        $region33: #{spatial_mix.1} parent=31 // pred_check
          %p184 = pneg %p37
        $region34: #{spatial_mix.1} parent=31 // pred_check_branch
          %186 = sbr.rel (%p184) target = $region36
        $region35: #{spatial_mix.1} parent=31 // pred_region
          %s187 = sand.u32 %s27, 1
          %s188 = scalar_lea.sflag [#allocation3], %s187
          %s189 = sand.u32 %s27, 1
          %s190 = smul.addr %s189, 8
          %s191 = scalar_lea.vmem [#allocation2], %s190
          %s193 = ssub.s32 128, 128
          %194 = vsyncadd %s188, %s193
          %s195 = smul.addr %s17, 128
          %s196 = scalar_lea.hbm %s0, %s195
          %s198 = sshll.u32 %s191, 4
          %s199 = int_to_ptr.vmem [resolvable:$true] %s198
          %201 = dma.hbm_to_vmem [thread:$0]  %s196, 128, %s199, %s188
        $region36: #{spatial_mix.1} parent=31 // pred_fallthru
          _
      $region32: #{spatial_mix.1} parent=5 // pred_fallthru
        _
      %p202 = scmp.le.s32.totalorder 1, %s17
      %p203 = scmp.lt.s32.totalorder %s17, 3
      %p204 = pnand %p202, %p203
      %p205 = pneg %p204
      // Predicated region
      $region37: #{spatial_mix.1} parent=5 // pred_check
        _
      $region38: #{spatial_mix.1} parent=5 // pred_check_branch
        %207 = sbr.rel (%p204) target = $region40
      $region39: #{spatial_mix.1} parent=5 // pred_region
        %s208 = ssub.s32 %s17, 1
        %s209 = sand.u32 %s30, 1
        %s210 = scalar_lea.sflag [#allocation3], %s209
        %s211 = sand.u32 %s30, 1
        %s212 = smul.addr %s211, 8
        %s213 = scalar_lea.vmem [#allocation2], %s212
        // Predicated region
        $region41: #{spatial_mix.1} parent=39 // pred_check
          %p214 = pneg %p43
        $region42: #{spatial_mix.1} parent=39 // pred_check_branch
          %216 = sbr.rel (%p214) target = $region44
        $region43: #{spatial_mix.1} parent=39 // pred_region
          %217 = dma.done %s210, 128
        $region44: #{spatial_mix.1} parent=39 // pred_fallthru
          _
        %s218 = sand.u32 %s30, 1
        %s219 = scalar_lea.sflag [#allocation3], %s218
        %s220 = sand.u32 %s30, 1
        %s221 = smul.addr %s220, 8
        %s222 = scalar_lea.vmem [#allocation2], %s221
        %p223 = pneg %p43
        %p224 = pneg %p40
        %p225 = pneg %p64
        %p226 = pneg %p61
        %p227 = pneg %p85
        %p228 = pneg %p82
        %p229 = pneg %p106
        %p230 = pneg %p103
        %p231 = pneg %p127
        %p232 = pneg %p124
        %p233 = pneg %p153
        %p234 = pneg %p150
        %s235 = sand.u32 %s140, 1
        %s236 = scalar_lea.sflag [#allocation4], %s235
        %s237 = sand.u32 %s140, 1
        %s238 = smul.addr %s237, 8
        %s239 = scalar_lea.vmem [#allocation5], %s238
        %v240 = vld [vmem:[%s1] sm:$0x1]
        %v241 = vld [vmem:[%s2] sm:$0x1]
        %v242 = vld [vmem:[%s3] sm:$0xff]
        %v243 = vld [vmem:[%s4] sm:$0xff]
        %245 = vset.pattern.permute.xlu0 0
        %246 = vperm.xlu0 %245, %v243
        %v247 = vpop.permute.xlu0 %246
        %v249 = vld [vmem:[%s213] sm:$0xff]
        %vm250 = vcmask 261120
        %v251 = vsel %vm250, %v249, 0.0
        %252 = vadd.xlane.f32.xlu0 %v251
        %v253 = vpop.xlane.xlu0 %252
        %v254 = vrcp.pop 32.0
        %v255 = vmul.f32 %v253, %v254
        %v256 = vsub.f32 %v249, %v255
        %v257 = vmul.f32 %v256, %v256
        %v258 = vsel %vm250, %v257, 0.0
        %259 = vadd.xlane.f32.xlu0 %v258
        %v260 = vpop.xlane.xlu0 %259
        %v261 = vmul.f32 %v260, %v254
        %v262 = vadd.f32 %v261, 1e-05
        %v263 = vrsqrt.pop %v262
        %v264 = vmul.f32 %v256, %v263
        %v266 = vlaneseq
        %v267 = vshrl.u32 %v266, 7
        %v268 = vsub.s32 0, %v267
        %v269 = vrot.slane %v240, %v268
        %v271 = vmul.f32 %v264, %v269
        %v273 = vlaneseq
        %v274 = vshrl.u32 %v273, 7
        %v275 = vsub.s32 0, %v274
        %v276 = vrot.slane %v241, %v275
        %v278 = vadd.f32 %v271, %v276
        %vm279 = vcmask 64512
        %v281 = vsel %vm279, %v242, 0
        %283 = vmatprep.subr.mxu0 0.0
        %284 = vmatpush1.msra.mxu0 0.0
        %285 = vmatprep.subr.mxu0 0.0
        %286 = vmatpush1.msra.mxu0 0.0
        %287 = vmatprep.subr.mxu0 0.0
        %288 = vmatpush1.msra.mxu0 0.0
        %289 = vmatprep.subr.mxu0 0.0
        %290 = vmatpush1.msra.mxu0 0.0
        %291 = vmatprep.subr.mxu0 0.0
        %292 = vmatpush1.msra.mxu0 0.0
        %293 = vmatprep.subr.mxu0 0.0
        %294 = vmatpush1.msra.mxu0 0.0
        %295 = vmatprep.subr.mxu0 0.0
        %296 = vmatpush1.msra.mxu0 0.0
        %297 = vmatprep.subr.mxu0 0.0
        %298 = vmatpush1.msra.mxu0 0.0
        %299 = vmatprep.subr.mxu0 0.0
        %300 = vmatpush1.msra.mxu0 0.0
        %301 = vmatprep.subr.mxu0 0.0
        %302 = vmatpush1.msra.mxu0 0.0
        %303 = vmatprep.subr.mxu0 0.0
        %304 = vmatpush1.msra.mxu0 0.0
        %305 = vmatprep.subr.mxu0 0.0
        %306 = vmatpush1.msra.mxu0 0.0
        %307 = vmatprep.subr.mxu0 0.0
        %308 = vmatpush1.msra.mxu0 0.0
        %309 = vmatprep.subr.mxu0 0.0
        %310 = vmatpush1.msra.mxu0 0.0
        %311 = vmatprep.subr.mxu0 0.0
        %312 = vmatpush1.msra.mxu0 0.0
        %313 = vmatprep.subr.mxu0 0.0
        %314 = vmatpush1.msra.mxu0 %v278
        %315 = vmatprep.subr.mxu0 0.0
        %316 = vmatpush2.msra.mxu0 0.0
        %317 = vmatprep.subr.mxu0 0.0
        %318 = vmatpush2.msra.mxu0 0.0
        %319 = vmatprep.subr.mxu0 0.0
        %320 = vmatpush2.msra.mxu0 0.0
        %321 = vmatprep.subr.mxu0 0.0
        %322 = vmatpush2.msra.mxu0 0.0
        %323 = vmatprep.subr.mxu0 0.0
        %324 = vmatpush2.msra.mxu0 0.0
        %325 = vmatprep.subr.mxu0 0.0
        %326 = vmatpush2.msra.mxu0 0.0
        %327 = vmatprep.subr.mxu0 0.0
        %328 = vmatpush2.msra.mxu0 0.0
        %329 = vmatprep.subr.mxu0 0.0
        %330 = vmatpush2.msra.mxu0 0.0
        %331 = vmatprep.subr.mxu0 0.0
        %332 = vmatpush2.msra.mxu0 0.0
        %333 = vmatprep.subr.mxu0 0.0
        %334 = vmatpush2.msra.mxu0 0.0
        %335 = vmatprep.subr.mxu0 0.0
        %336 = vmatpush2.msra.mxu0 0.0
        %337 = vmatprep.subr.mxu0 0.0
        %338 = vmatpush2.msra.mxu0 0.0
        %339 = vmatprep.subr.mxu0 0.0
        %340 = vmatpush2.msra.mxu0 0.0
        %341 = vmatprep.subr.mxu0 0.0
        %342 = vmatpush2.msra.mxu0 0.0
        %343 = vmatprep.subr.mxu0 0.0
        %344 = vmatpush2.msra.mxu0 0.0
        %345 = vmatprep.subr.mxu0 0.0
        %346 = vmatpush2.msra.mxu0 0.0
        %347 = vmatprep.mubr.f32.mxu0 0.0
        %348 = vmatmul.mubr.f32.gmra.mxu0 %v281
        %v349 = vpop.f32.mrf.mxu0
        %v350 = vadd.f32 %v247, %v349
        %v351 = vpop.f32.mrf.mxu0
        %352 = vdwg.mxu0
        %353 = vst.msk [vmem:[%s239] sm:$0xff] %vm250, %v350
        %s354 = sand.u32 %s140, 1
        %s355 = scalar_lea.sflag [#allocation4], %s354
        %s356 = sand.u32 %s140, 1
        %s357 = smul.addr %s356, 8
        %s358 = scalar_lea.vmem [#allocation5], %s357
        // Predicated region
        $region45: #{spatial_mix.1} parent=39 // pred_check
          %p359 = pneg %p150
        $region46: #{spatial_mix.1} parent=39 // pred_check_branch
          %361 = sbr.rel (%p359) target = $region48
        $region47: #{spatial_mix.1} parent=39 // pred_region
          %s363 = ssub.s32 128, 128
          %364 = vsyncadd %s355, %s363
          %s365 = smul.addr %s22, 128
          %s366 = scalar_lea.hbm %s5, %s365
          %s368 = sshll.u32 %s358, 4
          %s369 = int_to_ptr.vmem [resolvable:$true] %s368
          %371 = dma.vmem_to_hbm [thread:$0]  %s369, 128, %s366, %s355
        $region48: #{spatial_mix.1} parent=39 // pred_fallthru
          _
      $region40: #{spatial_mix.1} parent=5 // pred_fallthru
        _
      %p372 = scmp.le.s32.totalorder 2, %s17
      // Predicated region
      $region49: #{spatial_mix.1} parent=5 // pred_check
        %p373 = pneg %p372
      $region50: #{spatial_mix.1} parent=5 // pred_check_branch
        %375 = sbr.rel (%p373) target = $region52
      $region51: #{spatial_mix.1} parent=5 // pred_region
        %s376 = ssub.s32 %s17, 2
        // Predicated region
        $region53: #{spatial_mix.1} parent=51 // pred_check
          %p377 = pneg %p156
        $region54: #{spatial_mix.1} parent=51 // pred_check_branch
          %379 = sbr.rel (%p377) target = $region56
        $region55: #{spatial_mix.1} parent=51 // pred_region
          %s380 = sand.u32 %s141, 1
          %s381 = scalar_lea.sflag [#allocation4], %s380
          %s382 = sand.u32 %s141, 1
          %s383 = smul.addr %s382, 8
          %s384 = scalar_lea.vmem [#allocation5], %s383
          %385 = dma.done %s381, 128
        $region56: #{spatial_mix.1} parent=51 // pred_fallthru
          _
      $region52: #{spatial_mix.1} parent=5 // pred_fallthru
        _
    $region6: #{spatial_mix.1} parent=1 // loop_footer
      %s21 = sadd.s32 1, %s17
    $region7: #{spatial_mix.1} parent=1 // loop_footer_branch
      %16 = sbr.rel target = $region3
    $region8: #{spatial_mix.1} parent=1 // loop_exit
      _
    %386 = vsyncpa [#allocation3], 1
    %s387 = scalar_lea.sflag [#allocation3], 1
    %388 = vsyncpa %s387, 1
    %389 = vsyncpa [#allocation4], 1
    %s390 = scalar_lea.sflag [#allocation4], 1
    %391 = vsyncpa %s390, 1

</llo_original>
